<compile_context>
chip_gen: v5e
topology: v5e:2x2
jax: 0.10.0
libtpu: 0.0.40
codegen_flags: <defaults>
</compile_context>

<pallas_src>
import functools

import jax
import jax.numpy as jnp
from jax.experimental import pallas as pl
from jax.experimental.pallas import tpu as pltpu

_LANE = 128
_SUBLANE = 8


def _round_up(n, m):
    return ((n + m - 1) // m) * m


def _vmem_capacity_bytes(default_bytes=64 * 1024 * 1024):
    """Per-core VMEM capacity; conservative (v7x-sized) fallback if unavailable."""
    try:
        cap = int(pltpu.get_tpu_info().vmem_capacity_bytes)
        if cap > 0:
            return cap
    except Exception:
        pass
    return default_bytes


def _tile_footprint_bytes(tm, tn, H, x_bytes, w_bytes, o_bytes):
    """Conservative double-buffered VMEM footprint of one grid step."""
    h_lanes = _round_up(H, _LANE)
    n_lanes = _round_up(tn, _LANE)
    x_tile = _round_up(tm, _SUBLANE) * h_lanes * x_bytes
    w_tile = _round_up(H, _SUBLANE) * n_lanes * w_bytes
    b_tile = _SUBLANE * n_lanes * 4
    o_tile = _round_up(tm, _SUBLANE) * n_lanes * o_bytes
    # Every operand gets 2 buffers by default (weight/bias included even when
    # their block index is constant), so budget 2x across the board.
    return 2 * (x_tile + w_tile + b_tile + o_tile)


def _batch_tile_candidates(B):
    if B < _SUBLANE:
        return [B]  # a block dim equal to the full array dim is always legal
    top = min(512, (B // _SUBLANE) * _SUBLANE)
    cands = [c for c in (512, 256, 128, 64, 32, 16, 8) if c <= top]
    if top not in cands:
        cands = [top] + cands
    return cands


def _choose_tiles(B, H, C, x_bytes, w_bytes, o_bytes, budget):
    # Preferred: whole class dim in a single tile -> head weight/bias DMA'd
    # exactly once and resident across every batch tile.
    for tm in _batch_tile_candidates(B):
        if _tile_footprint_bytes(tm, C, H, x_bytes, w_bytes, o_bytes) <= budget:
            return tm, C, True
    # Fallback (very wide heads): tile the class dim; the grid is ordered
    # (class, batch) so the weight block stays resident across the inner loop.
    tm = B if B < _SUBLANE else min(256, (B // _SUBLANE) * _SUBLANE)
    tn = min(4096, _round_up(C, _LANE))
    while tn > _LANE and _tile_footprint_bytes(tm, tn, H, x_bytes, w_bytes, o_bytes) > budget:
        tn = max(_LANE, _round_up(tn // 2, _LANE))
    while tm >= 2 * _SUBLANE and _tile_footprint_bytes(tm, tn, H, x_bytes, w_bytes, o_bytes) > budget:
        tm = max(_SUBLANE, (tm // 2 // _SUBLANE) * _SUBLANE)
    return tm, tn, False


def _head_temp_kernel(inv_t_ref, x_ref, w_ref, b_ref, o_ref, *, compute_dtype):
    # inv_t_ref: (1,)    f32 scalar (1 / temperature) in SMEM
    # x_ref:     (tm, H) feature tile (original dtype; cast to bf16 in VMEM)
    # w_ref:     (H, tn) head-weight tile (compute_dtype), resident
    # b_ref:     (1, tn) f32 head-bias tile, resident
    # o_ref:     (tm, tn) temperature-scaled logits tile
    x = x_ref[...].astype(compute_dtype)
    logits = jnp.dot(x, w_ref[...], preferred_element_type=jnp.float32)
    logits = logits + b_ref[...].astype(jnp.float32)
    # temperature_scale: logits / temperature  (scalar broadcast; reciprocal is
    # precomputed once outside the grid loop).
    o_ref[...] = (logits * inv_t_ref[0]).astype(o_ref.dtype)


def vit_model_with_temperature(x, w, b, temperature, *,
                               compute_dtype=jnp.bfloat16,
                               out_dtype=jnp.float32,
                               tm=None, tn=None):
    """ViTModelWithTemperature forward hot path:
       logits = head(features); return logits / temperature."""
    B, H = x.shape
    Hw, C = w.shape
    assert H == Hw, "weight hidden dim mismatch"

    # One-time, small/static parameter prep (outside the activation hot path).
    w_c = jnp.asarray(w).astype(compute_dtype)
    b_c = jnp.asarray(b, jnp.float32).reshape(1, C)
    inv_t = 1.0 / jnp.asarray(temperature, jnp.float32).reshape(-1)[:1]

    vmem_cap = _vmem_capacity_bytes()
    vmem_budget = int(vmem_cap * 0.7)  # headroom for compiler internal scratch

    x_bytes = jnp.dtype(x.dtype).itemsize
    w_bytes = jnp.dtype(compute_dtype).itemsize
    o_bytes = jnp.dtype(out_dtype).itemsize
    a_tm, a_tn, _ = _choose_tiles(B, H, C, x_bytes, w_bytes, o_bytes, vmem_budget)
    tm = a_tm if tm is None else tm
    tn = a_tn if tn is None else tn
    single_class_tile = tn >= C
    if single_class_tile:
        tn = C

    kernel = functools.partial(_head_temp_kernel, compute_dtype=compute_dtype)
    smem_spec = pl.BlockSpec(memory_space=pltpu.MemorySpace.SMEM)

    if single_class_tile:
        # 1-D grid over batch tiles: weight/bias block indices are constant so
        # they are DMA'd once and stay resident; x streams double-buffered;
        # the ragged tail batch tile is masked (no pre-pad, no post-slice).
        grid = (pl.cdiv(B, tm),)
        in_specs = [
            smem_spec,                                  # 1/temperature scalar
            pl.BlockSpec((tm, H), lambda i: (i, 0)),    # streamed activations
            pl.BlockSpec((H, C), lambda i: (0, 0)),     # resident head weight
            pl.BlockSpec((1, C), lambda i: (0, 0)),     # resident head bias
        ]
        out_specs = pl.BlockSpec((tm, C), lambda i: (i, 0))
        # Batch-parallel: v7x megacore shards batch tiles across the 2 TCs
        # (weight is cheap and resident per-core); no-op on v5e/v6e.
        dim_sem = ("parallel",)
    else:
        # Very wide head: tile the class dim, batch innermost so the (H, tn)
        # weight block index is constant across the inner loop (weight is
        # streamed once per class tile, not once per batch tile).
        grid = (pl.cdiv(C, tn), pl.cdiv(B, tm))
        in_specs = [
            smem_spec,
            pl.BlockSpec((tm, H), lambda j, i: (i, 0)),
            pl.BlockSpec((H, tn), lambda j, i: (0, j)),
            pl.BlockSpec((1, tn), lambda j, i: (0, j)),
        ]
        out_specs = pl.BlockSpec((tm, tn), lambda j, i: (i, j))
        dim_sem = ("parallel", "arbitrary")

    out = pl.pallas_call(
        kernel,
        out_shape=jax.ShapeDtypeStruct((B, C), out_dtype),
        grid=grid,
        in_specs=in_specs,
        out_specs=out_specs,
        compiler_params=pltpu.CompilerParams(
            dimension_semantics=dim_sem,
            vmem_limit_bytes=int(min(vmem_cap, vmem_budget + (16 << 20))),
        ),
    )(inv_t, x, w_c, b_c)
    return out


if __name__ == "__main__":
    # Small shapes: batch=8, hidden=32, num_classes=16 (pooled ViT features ->
    # classification head -> temperature scaling).
    B, H, C = 8, 32, 16

    key = jax.random.PRNGKey(0)
    kx, kw, kb = jax.random.split(key, 3)

    x = jax.random.normal(kx, (B, H), dtype=jnp.float32)          # pooled features
    w = jax.random.normal(kw, (H, C), dtype=jnp.float32) * 0.05   # head weight
    b = jax.random.normal(kb, (C,), dtype=jnp.float32) * 0.01     # head bias
    temperature = jnp.ones((1,), dtype=jnp.float32) * 1.5         # nn.Parameter(torch.ones(1)*1.5)

    out = vit_model_with_temperature(x, w, b, temperature)
    out = jax.block_until_ready(out)

    # Plain-JAX reference with the same bf16-input / f32-accumulate recipe.
    ref = (jnp.dot(x.astype(jnp.bfloat16), w.astype(jnp.bfloat16),
                   preferred_element_type=jnp.float32)
           + b.reshape(1, C)) / temperature[0]

    assert out.shape == (B, C)
    assert jnp.allclose(out, ref, atol=1e-2, rtol=1e-2), "mismatch vs reference"

    print("KERNEL_OK")
</pallas_src>

<mosaic_0001>
module attributes {stable_mosaic.version = 11 : i64} {
  func.func @_head_temp_kernel(%arg0: i32, %arg1: memref<1xf32, #tpu.memory_space<smem>>, %arg2: memref<8x32xf32, #tpu.memory_space<vmem>>, %arg3: memref<32x16xbf16, #tpu.memory_space<vmem>>, %arg4: memref<1x16xf32, #tpu.memory_space<vmem>>, %arg5: memref<8x16xf32, #tpu.memory_space<vmem>>) attributes {dimension_semantics = [#tpu.dimension_semantics<parallel>], iteration_bounds = array<i64: 1>, scalar_prefetch = 0 : i64, scratch_operands = 0 : i64, tpu.core_type = #tpu.core_type<tc>, window_params = [{transform_indices = @transform_0, window_bounds = array<i64: 1>}, {transform_indices = @transform_1, window_bounds = array<i64: 8, 32>}, {pipeline_mode = #tpu.pipeline_mode<synchronous>, transform_indices = @transform_2, window_bounds = array<i64: 32, 16>}, {pipeline_mode = #tpu.pipeline_mode<synchronous>, transform_indices = @transform_3, window_bounds = array<i64: 1, 16>}, {transform_indices = @transform_4, window_bounds = array<i64: 8, 16>}]} {
    %c0 = arith.constant 0 : index
    %c0_0 = arith.constant 0 : index
    %0 = vector.load %arg2[%c0, %c0_0] : memref<8x32xf32, #tpu.memory_space<vmem>>, vector<8x32xf32>
    %1 = arith.truncf %0 : vector<8x32xf32> to vector<8x32xbf16>
    %c0_1 = arith.constant 0 : index
    %c0_2 = arith.constant 0 : index
    %2 = vector.load %arg3[%c0_1, %c0_2] : memref<32x16xbf16, #tpu.memory_space<vmem>>, vector<32x16xbf16>
    %cst = arith.constant dense<0.000000e+00> : vector<8x16xf32>
    %3 = tpu.matmul %1, %2, %cst {dimension_numbers = #tpu.dot_dimension_numbers<[1], [0], [0], [1], [0, 0, 1, 1], [], []>} : vector<8x32xbf16>, vector<32x16xbf16>, vector<8x16xf32> -> vector<8x16xf32>
    %c0_3 = arith.constant 0 : index
    %c0_4 = arith.constant 0 : index
    %4 = vector.load %arg4[%c0_3, %c0_4] : memref<1x16xf32, #tpu.memory_space<vmem>>, vector<1x16xf32>
    %5 = vector.broadcast %4 : vector<1x16xf32> to vector<8x16xf32>
    %6 = arith.addf %3, %5 : vector<8x16xf32>
    %c0_5 = arith.constant 0 : index
    %7 = memref.load %arg1[%c0_5] : memref<1xf32, #tpu.memory_space<smem>>
    %8 = vector.broadcast %7 : f32 to vector<8x16xf32>
    %9 = arith.mulf %6, %8 : vector<8x16xf32>
    %c0_6 = arith.constant 0 : index
    %c0_7 = arith.constant 0 : index
    %10 = vector.load %arg5[%c0_6, %c0_7] : memref<8x16xf32, #tpu.memory_space<vmem>>, vector<8x16xf32>
    tpu.vector_store %arg5[%c0_6, %c0_7], %9 {strides = array<i32>} : memref<8x16xf32, #tpu.memory_space<vmem>>, vector<8x16xf32>,
    return
  }
  func.func @transform_0(%arg0: i32) -> i32 {
    %c0_i32 = arith.constant 0 : i32
    %c0_i32_0 = arith.constant 0 : i32
    return %c0_i32 : i32
  }
  func.func @transform_1(%arg0: i32) -> (i32, i32) {
    %c0_i32 = arith.constant 0 : i32
    %c0_i32_0 = arith.constant 0 : i32
    return %arg0, %c0_i32 : i32, i32
  }
  func.func @transform_2(%arg0: i32) -> (i32, i32) {
    %c0_i32 = arith.constant 0 : i32
    %c0_i32_0 = arith.constant 0 : i32
    %c0_i32_1 = arith.constant 0 : i32
    return %c0_i32, %c0_i32_0 : i32, i32
  }
  func.func @transform_3(%arg0: i32) -> (i32, i32) {
    %c0_i32 = arith.constant 0 : i32
    %c0_i32_0 = arith.constant 0 : i32
    %c0_i32_1 = arith.constant 0 : i32
    return %c0_i32, %c0_i32_0 : i32, i32
  }
  func.func @transform_4(%arg0: i32) -> (i32, i32) {
    %c0_i32 = arith.constant 0 : i32
    %c0_i32_0 = arith.constant 0 : i32
    return %arg0, %c0_i32 : i32, i32
  }
}

</mosaic_0001>

<llo_original>
// kernel: tpu_custom_call.1
$region0: #{tpu_custom_call.1}
  #allocation0 [shape = 'u32[]', space=smem, size = 0x4, offset = 0x4, fixed_abs, tag = 'smem constant byte address 0x4 - core index']
  #allocation1 [shape = 'u32[72,128]{1,0:T(1,128)}', space=vmem, size = 0x9000, scoped, tag = 'internal scratch']
  #allocation2 [shape = 'f32[1]{0:T(128)S(6)}', space=smem, size = 0x200, scoped, tag = 'scoped memory for tpu_custom_call.1']
  %s0 = inlined_call_operand.<no memory space> [shape: f32[1], index: 0, kind: input, shape index: {}]
  %s1 = inlined_call_operand.vmem [shape: f32[8,32], index: 1, kind: input, shape index: {}]
  %s2 = inlined_call_operand.vmem [shape: bf16[32,16], index: 2, kind: input, shape index: {}]
  %s3 = inlined_call_operand.vmem [shape: f32[1,16], index: 3, kind: input, shape index: {}]
  %s4 = inlined_call_operand.hbm [shape: f32[8,16], index: 4, kind: output, shape index: {}]
  %s5 = sld [smem:[#allocation0]]
  $region26: #{tpu_custom_call.1} parent=0
    _
  %s7 = ssub.s32 1, %s5
  %s8 = scalar_select 0, %s7, %s5
  %9 = sst [smem:[#allocation2]] %s0
  $region1: #{tpu_custom_call.1} parent=0
    #allocation3 [shape = 'u8[4096]{0}', space=vmem, size = 0x1000, scoped, tag = 'output window, operand 0, single buffered']
    #allocation4 [shape = 's32[1]{0}', space=sflag, size = 0x4, scoped, tag = 'scoped memory for tpu_custom_call.1']
    %10 = vsyncpa [#allocation4], 0
    // Predicated region
    $region2: #{tpu_custom_call.1} parent=1 // pred_check
      _
    $region3: #{tpu_custom_call.1} parent=1 // pred_check_branch
      %12 = sbr.rel (0) target = $region5
    $region4: #{tpu_custom_call.1} parent=1 // pred_region
      _
    $region5: #{tpu_custom_call.1} parent=1 // pred_fallthru
      _
    // Predicated region
    $region6: #{tpu_custom_call.1} parent=1 // pred_check
      _
    $region7: #{tpu_custom_call.1} parent=1 // pred_check_branch
      %14 = sbr.rel (0) target = $region9
    $region8: #{tpu_custom_call.1} parent=1 // pred_region
      _
    $region9: #{tpu_custom_call.1} parent=1 // pred_fallthru
      _
    // Predicated region
    $region10: #{tpu_custom_call.1} parent=1 // pred_check
      _
    $region11: #{tpu_custom_call.1} parent=1 // pred_check_branch
      %16 = sbr.rel (0) target = $region13
    $region12: #{tpu_custom_call.1} parent=1 // pred_region
      _
    $region13: #{tpu_custom_call.1} parent=1 // pred_fallthru
      _
    // Predicated region
    $region14: #{tpu_custom_call.1} parent=1 // pred_check
      _
    $region15: #{tpu_custom_call.1} parent=1 // pred_check_branch
      %18 = sbr.rel (0) target = $region17
    $region16: #{tpu_custom_call.1} parent=1 // pred_region
      _
    $region17: #{tpu_custom_call.1} parent=1 // pred_fallthru
      _
    %v20 = vld [vmem:[%s1] sm:$0xff]
    %v21 = vpack.c.bf16 %v20, %v20
    %v22 = vld [vmem:[%s2] sm:$0xf]
    %v23 = vld [vmem:[%s2 + $0x4] sm:$0xf]
    %v24 = vld [vmem:[%s2 + $0x8] sm:$0xf]
    %v25 = vld [vmem:[%s2 + $0xc] sm:$0xf]
    %v26 = vld [vmem:[%s3] sm:$0x1]
    %v28 = vperm.slane %v26, 0
    %v34 = vunpack.c.l.b16 %v22
    %v35 = vunpack.c.l.b16 %v23
    %v36 = vunpack.c.l.b16 %v24
    %v37 = vunpack.c.l.b16 %v25
    %v38 = vpack.c.b16 %v35, %v34
    %v39 = vpack.c.b16 %v37, %v36
    %vm42 = vcmask 261120
    %v44 = vsel %vm42, %v21, 0
    %46 = vmatpush.bf16.msra.mxu0 0
    %47 = vmatpush.bf16.msra.mxu0 0
    %48 = vmatpush.bf16.msra.mxu0 0
    %49 = vmatpush.bf16.msra.mxu0 0
    %50 = vmatpush.bf16.msra.mxu0 0
    %51 = vmatpush.bf16.msra.mxu0 0
    %52 = vmatpush.bf16.msra.mxu0 %v39
    %53 = vmatpush.bf16.msra.mxu0 %v38
    %54 = vmatmul.bf16.gmra.mxu0 %v44
    %v55 = vpop.f32.mrf.mxu0
    %v56 = vadd.f32 %v28, %v55
    %v57 = vpop.f32.mrf.mxu0
    %58 = vdwg.mxu0
    %s59 = sld [smem:[#allocation2]]
    %v60 = vstv %s59
    %v61 = vmul.f32 %v56, %v60
    %vm62 = vcmask 130048
    %63 = vst.msk [vmem:[#allocation3] sm:$0xff] %vm62, %v61
    // Predicated region
    $region18: #{tpu_custom_call.1} parent=1 // pred_check
      _
    $region19: #{tpu_custom_call.1} parent=1 // pred_check_branch
      %65 = sbr.rel (0) target = $region21
    $region20: #{tpu_custom_call.1} parent=1 // pred_region
      %67 = vsyncadd [#allocation4], 0
      %s69 = sshll.u32 [#allocation3], 4
      %s70 = int_to_ptr.vmem [resolvable:$true] %s69
      %s71 = sshll.u32 %s4, 4
      %s72 = int_to_ptr.hbm [resolvable:$true] %s71
      %74 = dma.vmem_to_hbm [thread:$0]  %s70, 128, %s72, [#allocation4]
    $region21: #{tpu_custom_call.1} parent=1 // pred_fallthru
      _
    // Predicated region
    $region22: #{tpu_custom_call.1} parent=1 // pred_check
      _
    $region23: #{tpu_custom_call.1} parent=1 // pred_check_branch
      %76 = sbr.rel (0) target = $region25
    $region24: #{tpu_custom_call.1} parent=1 // pred_region
      %78 = dma.done [#allocation4], 128
    $region25: #{tpu_custom_call.1} parent=1 // pred_fallthru
      _
    %79 = vsyncpa [#allocation4], 1

</llo_original>
